<compile_context>
chip_gen: v7x
topology: tpu7x:2x2x1
jax: 0.10.0
libtpu: 0.0.40
codegen_flags: <defaults>
</compile_context>

<pallas_src>
import functools
import math

import jax
import jax.numpy as jnp
from jax import lax
from jax.experimental import pallas as pl
from jax.experimental.pallas import tpu as pltpu

_NEG_INF = -1e30  # finite f32 fill so fully-masked rows stay finite (no NaN)


def _flash_fwd_kernel(seq_lens_ref,                 # SMEM int32[B] (scalar prefetch)
                      q_ref, k_ref, v_ref,          # VMEM blocks (1,Tq,Hq*D)/(1,Tk,Hkv*D)
                      o_ref,                        # VMEM block  (1,Tq,Hq*D)
                      q_sc, m_sc, l_sc, acc_sc,     # VMEM scratch
                      *, causal, scale, hq, hkv, d, tq, tk):
    groups = hq // hkv
    b = pl.program_id(0)
    qi = pl.program_id(1)
    ki = pl.program_id(2)
    n_kv = pl.num_programs(2)

    seq_len = seq_lens_ref[b]
    q_start = qi * tq
    k_start = ki * tk

    @pl.when(ki == 0)
    def _init():
        # Online-softmax running state.
        m_sc[...] = jnp.full(m_sc.shape, -jnp.inf, dtype=jnp.float32)
        l_sc[...] = jnp.zeros(l_sc.shape, dtype=jnp.float32)
        acc_sc[...] = jnp.zeros(acc_sc.shape, dtype=jnp.float32)
        # Pack the query block once per (b, q-tile) into a head-major
        # (Hq*Tq, D) slab with the softmax scale folded in; reused for every
        # KV tile so the per-step matmul M-dim is groups*Tq.
        for h in range(hq):
            q_sc[h * tq:(h + 1) * tq, :] = (
                q_ref[0, :, h * d:(h + 1) * d] * scale)

    # Skip KV tiles that are entirely padded or entirely above the causal
    # diagonal of this query tile (pure compute skip; DMA still pipelined).
    run = k_start < seq_len
    if causal:
        run = jnp.logical_and(run, k_start <= q_start + (tq - 1))

    @pl.when(run)
    def _body():
        mg = groups * tq
        # Combined padding + causal validity mask, shared by all kv heads.
        k_pos = k_start + lax.broadcasted_iota(jnp.int32, (mg, tk), 1)
        valid = k_pos < seq_len
        if causal:
            row = lax.broadcasted_iota(jnp.int32, (mg, tk), 0)
            q_pos = q_start + row % tq        # rows are head-major blocks of tq
            valid = jnp.logical_and(valid, k_pos <= q_pos)

        for hk in range(hkv):
            r0, r1 = hk * groups * tq, (hk + 1) * groups * tq
            q_g = q_sc[r0:r1, :]                         # (groups*tq, d), native dtype
            k_g = k_ref[0, :, hk * d:(hk + 1) * d]       # (tk, d)
            v_g = v_ref[0, :, hk * d:(hk + 1) * d]       # (tk, d)

            # Q K^T: native-dtype operands, f32 accumulation on the MXU.
            s = lax.dot_general(q_g, k_g, (((1,), (1,)), ((), ())),
                                preferred_element_type=jnp.float32)
            s = jnp.where(valid, s, _NEG_INF)

            m_prev = m_sc[r0:r1, :]
            m_new = jnp.maximum(m_prev, jnp.max(s, axis=-1, keepdims=True))
            alpha = jnp.exp(m_prev - m_new)
            p = jnp.exp(s - m_new)
            l_sc[r0:r1, :] = alpha * l_sc[r0:r1, :] + jnp.sum(
                p, axis=-1, keepdims=True)
            acc_sc[r0:r1, :] = alpha * acc_sc[r0:r1, :] + jnp.dot(
                p.astype(v_g.dtype), v_g, preferred_element_type=jnp.float32)
            m_sc[r0:r1, :] = m_new

    @pl.when(ki == n_kv - 1)
    def _finalize():
        q_pos = q_start + lax.broadcasted_iota(jnp.int32, (tq, 1), 0)
        q_valid = q_pos < seq_len              # padded query rows -> zeros
        for h in range(hq):
            r0 = h * tq
            out = acc_sc[r0:r0 + tq, :] * pl.reciprocal(
                l_sc[r0:r0 + tq, :], approx=True)
            out = jnp.where(q_valid, out, 0.0)
            o_ref[0, :, h * d:(h + 1) * d] = out.astype(o_ref.dtype)


def flash_attention_forward(q, k, v, attention_mask=None, causal=False,
                            *, q_block_size=128, kv_block_size=256):
    """q: (B, S, Hq, D); k, v: (B, S, Hkv, D); attention_mask: (B, S) 0/1 or None.

    Returns attn_output of shape (B, S, Hq, D), same dtype as q.
    """
    B, S, Hq, D = q.shape
    Bk, Sk, Hkv, Dk = k.shape
    assert (B, S, D) == (Bk, Sk, Dk), "only query_length == kv_seq_len supported"
    assert v.shape == k.shape
    assert Hq % Hkv == 0
    scale = 1.0 / math.sqrt(D)

    # Per-batch valid lengths (right-padded mask assumed, as HF's unpad path does).
    if attention_mask is None:
        seq_lens = jnp.full((B,), S, dtype=jnp.int32)
    else:
        seq_lens = jnp.sum(attention_mask.astype(jnp.int32), axis=-1).astype(jnp.int32)

    tq = min(q_block_size, S)
    tk = min(kv_block_size, S)
    assert S % tq == 0 and S % tk == 0, "S must divide the chosen block sizes"
    n_q, n_kv = S // tq, S // tk

    # Free (bitcast) reshapes: keep the [B, S, H, D] memory layout but present
    # (head, head_dim) fused so every in-kernel head slice is lane-aligned.
    q3 = q.reshape(B, S, Hq * D)
    k3 = k.reshape(B, S, Hkv * D)
    v3 = v.reshape(B, S, Hkv * D)

    kernel = functools.partial(_flash_fwd_kernel, causal=causal, scale=scale,
                               hq=Hq, hkv=Hkv, d=D, tq=tq, tk=tk)

    out3 = pl.pallas_call(
        kernel,
        out_shape=jax.ShapeDtypeStruct((B, S, Hq * D), q.dtype),
        grid_spec=pltpu.PrefetchScalarGridSpec(
            num_scalar_prefetch=1,
            grid=(B, n_q, n_kv),
            in_specs=[
                pl.BlockSpec((1, tq, Hq * D), lambda b, qi, ki, sl: (b, qi, 0)),
                pl.BlockSpec((1, tk, Hkv * D), lambda b, qi, ki, sl: (b, ki, 0)),
                pl.BlockSpec((1, tk, Hkv * D), lambda b, qi, ki, sl: (b, ki, 0)),
            ],
            out_specs=pl.BlockSpec((1, tq, Hq * D),
                                   lambda b, qi, ki, sl: (b, qi, 0)),
            scratch_shapes=[
                pltpu.VMEM((Hq * tq, D), q.dtype),       # packed, pre-scaled Q slab
                pltpu.VMEM((Hq * tq, 1), jnp.float32),   # running max m
                pltpu.VMEM((Hq * tq, 1), jnp.float32),   # running denom l
                pltpu.VMEM((Hq * tq, D), jnp.float32),   # running accumulator
            ],
        ),
        compiler_params=pltpu.CompilerParams(
            dimension_semantics=("parallel", "parallel", "arbitrary"),
            vmem_limit_bytes=64 * 1024 * 1024,
        ),
    )(seq_lens, q3, k3, v3)

    return out3.reshape(B, S, Hq, D)


def _reference(q, k, v, attention_mask, causal):
    """Plain-JAX reference with identical semantics (for sanity checking)."""
    B, S, Hq, D = q.shape
    Hkv = k.shape[2]
    groups = Hq // Hkv
    scale = 1.0 / math.sqrt(D)
    kf = jnp.repeat(k, groups, axis=2).astype(jnp.float32)    # (B,S,Hq,D)
    vf = jnp.repeat(v, groups, axis=2).astype(jnp.float32)
    qf = q.astype(jnp.float32)
    s = jnp.einsum("bqhd,bkhd->bhqk", qf, kf) * scale          # (B,Hq,S,S)
    key_ok = attention_mask[:, None, None, :] > 0.5
    qry_ok = attention_mask[:, None, :, None] > 0.5
    allowed = jnp.logical_and(key_ok, qry_ok)
    if causal:
        allowed = jnp.logical_and(
            allowed, jnp.tril(jnp.ones((S, S), dtype=bool))[None, None])
    s = jnp.where(allowed, s, -1e30)
    p = jax.nn.softmax(s, axis=-1)
    o = jnp.einsum("bhqk,bkhd->bqhd", p, vf)                   # (B,S,Hq,D)
    o = jnp.where(attention_mask[:, :, None, None] > 0.5, o, 0.0)
    return o.astype(q.dtype)


if __name__ == "__main__":
    # Module config: hidden_size=256, num_attention_heads=2, num_key_value_heads=1
    B, S = 2, 8
    hidden_size, num_heads, num_kv_heads = 256, 2, 1
    head_dim = hidden_size // num_heads  # 128

    key = jax.random.PRNGKey(0)
    kq, kk, kv_ = jax.random.split(key, 3)
    q = jax.random.normal(kq, (B, S, num_heads, head_dim), dtype=jnp.float32)
    k = jax.random.normal(kk, (B, S, num_kv_heads, head_dim), dtype=jnp.float32)
    v = jax.random.normal(kv_, (B, S, num_kv_heads, head_dim), dtype=jnp.float32)

    # right-padded attention mask (variable sequence lengths per batch)
    seq_lens = jnp.array([8, 5], dtype=jnp.int32)
    attention_mask = (jnp.arange(S)[None, :] < seq_lens[:, None]).astype(jnp.int32)
    ones_mask = jnp.ones((B, S), dtype=jnp.float32)

    # causal, padding mask
    out_c = jax.block_until_ready(
        flash_attention_forward(q, k, v, attention_mask, causal=True))
    ref_c = _reference(q, k, v, attention_mask.astype(jnp.float32), causal=True)
    assert out_c.shape == (B, S, num_heads, head_dim)
    assert jnp.allclose(out_c, ref_c, atol=2e-3, rtol=2e-3), "causal mismatch"

    # non-causal, padding mask
    out_n = jax.block_until_ready(
        flash_attention_forward(q, k, v, attention_mask, causal=False))
    ref_n = _reference(q, k, v, attention_mask.astype(jnp.float32), causal=False)
    assert jnp.allclose(out_n, ref_n, atol=2e-3, rtol=2e-3), "non-causal mismatch"

    # no-mask path (flash_attn_func branch)
    out_m = jax.block_until_ready(
        flash_attention_forward(q, k, v, None, causal=True))
    ref_m = _reference(q, k, v, ones_mask, causal=True)
    assert jnp.allclose(out_m, ref_m, atol=2e-3, rtol=2e-3), "no-mask mismatch"

    # bf16 inputs: native-dtype MXU operands, f32 softmax/accumulation
    qb, kb, vb = (x.astype(jnp.bfloat16) for x in (q, k, v))
    out_b = jax.block_until_ready(
        flash_attention_forward(qb, kb, vb, attention_mask, causal=True))
    ref_b = _reference(qb, kb, vb, attention_mask.astype(jnp.float32), causal=True)
    assert out_b.dtype == jnp.bfloat16
    assert jnp.allclose(out_b.astype(jnp.float32), ref_b.astype(jnp.float32),
                        atol=3e-2, rtol=3e-2), "bf16 mismatch"

    print("KERNEL_OK")
</pallas_src>

<mosaic_0001>
module attributes {stable_mosaic.version = 11 : i64} {
  func.func @_flash_fwd_kernel(%arg0: i32, %arg1: i32, %arg2: i32, %arg3: memref<2xi32, #tpu.memory_space<smem>>, %arg4: memref<1x8x256xf32, #tpu.memory_space<vmem>>, %arg5: memref<1x8x128xf32, #tpu.memory_space<vmem>>, %arg6: memref<1x8x128xf32, #tpu.memory_space<vmem>>, %arg7: memref<1x8x256xf32, #tpu.memory_space<vmem>>, %arg8: memref<16x128xf32, #tpu.memory_space<vmem>>, %arg9: memref<16x1xf32, #tpu.memory_space<vmem>>, %arg10: memref<16x1xf32, #tpu.memory_space<vmem>>, %arg11: memref<16x128xf32, #tpu.memory_space<vmem>>) attributes {dimension_semantics = [#tpu.dimension_semantics<parallel>, #tpu.dimension_semantics<parallel>, #tpu.dimension_semantics<arbitrary>], iteration_bounds = array<i64: 2, 1, 1>, scalar_prefetch = 1 : i64, scratch_operands = 4 : i64, tpu.core_type = #tpu.core_type<tc>, window_params = [{transform_indices = @transform_0, window_bounds = array<i64: 1, 8, 256>}, {transform_indices = @transform_1, window_bounds = array<i64: 1, 8, 128>}, {transform_indices = @transform_2, window_bounds = array<i64: 1, 8, 128>}, {transform_indices = @transform_3, window_bounds = array<i64: 1, 8, 256>}]} {
    %0 = arith.index_cast %arg0 : i32 to index
    %1 = memref.load %arg3[%0] : memref<2xi32, #tpu.memory_space<smem>>
    %c8_i32 = arith.constant 8 : i32
    %2 = arith.muli %arg1, %c8_i32 : i32
    %c8_i32_0 = arith.constant 8 : i32
    %3 = arith.muli %arg2, %c8_i32_0 : i32
    %c0_i32 = arith.constant 0 : i32
    %4 = arith.cmpi eq, %arg2, %c0_i32 : i32
    %5 = arith.extui %4 : i1 to i32
    %c0_i32_1 = arith.constant 0 : i32
    %6 = arith.cmpi ne, %5, %c0_i32_1 : i32
    scf.if %6 {
      %cst = arith.constant 0xFF800000 : f32
      %16 = vector.broadcast %cst : f32 to vector<16x1xf32>
      %c0 = arith.constant 0 : index
      %c0_5 = arith.constant 0 : index
      %17 = vector.load %arg9[%c0, %c0_5] : memref<16x1xf32, #tpu.memory_space<vmem>>, vector<16x1xf32>
      tpu.vector_store %arg9[%c0, %c0_5], %16 {strides = array<i32>} : memref<16x1xf32, #tpu.memory_space<vmem>>, vector<16x1xf32>,
      %cst_6 = arith.constant 0.000000e+00 : f32
      %18 = vector.broadcast %cst_6 : f32 to vector<16x1xf32>
      %c0_7 = arith.constant 0 : index
      %c0_8 = arith.constant 0 : index
      %19 = vector.load %arg10[%c0_7, %c0_8] : memref<16x1xf32, #tpu.memory_space<vmem>>, vector<16x1xf32>
      tpu.vector_store %arg10[%c0_7, %c0_8], %18 {strides = array<i32>} : memref<16x1xf32, #tpu.memory_space<vmem>>, vector<16x1xf32>,
      %cst_9 = arith.constant 0.000000e+00 : f32
      %20 = vector.broadcast %cst_9 : f32 to vector<16x128xf32>
      %c0_10 = arith.constant 0 : index
      %c0_11 = arith.constant 0 : index
      %21 = vector.load %arg11[%c0_10, %c0_11] : memref<16x128xf32, #tpu.memory_space<vmem>>, vector<16x128xf32>
      tpu.vector_store %arg11[%c0_10, %c0_11], %20 {strides = array<i32>} : memref<16x128xf32, #tpu.memory_space<vmem>>, vector<16x128xf32>,
      %c0_12 = arith.constant 0 : index
      %c0_13 = arith.constant 0 : index
      %c0_14 = arith.constant 0 : index
      %22 = vector.load %arg4[%c0_12, %c0_13, %c0_14] : memref<1x8x256xf32, #tpu.memory_space<vmem>>, vector<1x8x128xf32>
      %23 = vector.shape_cast %22 : vector<1x8x128xf32> to vector<8x128xf32>
      %cst_15 = arith.constant 0.0883883461 : f32
      %24 = vector.broadcast %cst_15 : f32 to vector<8x128xf32>
      %25 = arith.mulf %23, %24 : vector<8x128xf32>
      %c0_16 = arith.constant 0 : index
      %c0_17 = arith.constant 0 : index
      %26 = vector.load %arg8[%c0_16, %c0_17] : memref<16x128xf32, #tpu.memory_space<vmem>>, vector<8x128xf32>
      tpu.vector_store %arg8[%c0_16, %c0_17], %25 {strides = array<i32>} : memref<16x128xf32, #tpu.memory_space<vmem>>, vector<8x128xf32>,
      %c0_18 = arith.constant 0 : index
      %c0_19 = arith.constant 0 : index
      %c128 = arith.constant 128 : index
      %27 = vector.load %arg4[%c0_18, %c0_19, %c128] : memref<1x8x256xf32, #tpu.memory_space<vmem>>, vector<1x8x128xf32>
      %28 = vector.shape_cast %27 : vector<1x8x128xf32> to vector<8x128xf32>
      %cst_20 = arith.constant 0.0883883461 : f32
      %29 = vector.broadcast %cst_20 : f32 to vector<8x128xf32>
      %30 = arith.mulf %28, %29 : vector<8x128xf32>
      %c8 = arith.constant 8 : index
      %c0_21 = arith.constant 0 : index
      %31 = vector.load %arg8[%c8, %c0_21] : memref<16x128xf32, #tpu.memory_space<vmem>>, vector<8x128xf32>
      tpu.vector_store %arg8[%c8, %c0_21], %30 {strides = array<i32>} : memref<16x128xf32, #tpu.memory_space<vmem>>, vector<8x128xf32>,
    } else {
    }
    %7 = arith.cmpi slt, %3, %1 : i32
    %c7_i32 = arith.constant 7 : i32
    %8 = arith.addi %2, %c7_i32 : i32
    %9 = arith.cmpi sle, %3, %8 : i32
    %10 = arith.andi %7, %9 : i1
    %11 = arith.extui %10 : i1 to i32
    %c0_i32_2 = arith.constant 0 : i32
    %12 = arith.cmpi ne, %11, %c0_i32_2 : i32
    scf.if %12 {
      %16 = tpu.iota {dimensions = array<i32: 1>} : vector<16x8xi32>
      %17 = vector.broadcast %3 : i32 to vector<16x8xi32>
      %18 = arith.addi %17, %16 : vector<16x8xi32>
      %19 = vector.broadcast %1 : i32 to vector<16x8xi32>
      %20 = arith.cmpi slt, %18, %19 : vector<16x8xi32>
      %21 = tpu.iota {dimensions = array<i32: 0>} : vector<16x8xi32>
      %c8_i32_5 = arith.constant 8 : i32
      %c0_i32_6 = arith.constant 0 : i32
      %22 = arith.cmpi eq, %c8_i32_5, %c0_i32_6 : i32
      %c1_i32 = arith.constant 1 : i32
      %23 = arith.select %22, %c1_i32, %c8_i32_5 : i32
      %24 = vector.broadcast %23 : i32 to vector<16x8xi32>
      %25 = arith.remsi %21, %24 : vector<16x8xi32>
      %c0_i32_7 = arith.constant 0 : i32
      %26 = vector.broadcast %c0_i32_7 : i32 to vector<16x8xi32>
      %27 = arith.cmpi ne, %25, %26 : vector<16x8xi32>
      %c0_i32_8 = arith.constant 0 : i32
      %28 = vector.broadcast %c0_i32_8 : i32 to vector<16x8xi32>
      %29 = arith.cmpi slt, %25, %28 : vector<16x8xi32>
      %c0_i32_9 = arith.constant 0 : i32
      %30 = arith.cmpi slt, %23, %c0_i32_9 : i32
      %31 = vector.broadcast %30 : i1 to vector<16x8xi1>
      %32 = vector.broadcast %31 : vector<16x8xi1> to vector<16x8xi1>
      %33 = arith.xori %29, %32 : vector<16x8xi1>
      %34 = arith.andi %33, %27 : vector<16x8xi1>
      %35 = vector.broadcast %23 : i32 to vector<16x8xi32>
      %36 = arith.addi %25, %35 : vector<16x8xi32>
      %37 = arith.select %34, %36, %25 : vector<16x8xi1>, vector<16x8xi32>
      %38 = vector.broadcast %2 : i32 to vector<16x8xi32>
      %39 = arith.addi %38, %37 : vector<16x8xi32>
      %40 = arith.cmpi sle, %18, %39 : vector<16x8xi32>
      %41 = arith.andi %20, %40 : vector<16x8xi1>
      %c0 = arith.constant 0 : index
      %c0_10 = arith.constant 0 : index
      %42 = vector.load %arg8[%c0, %c0_10] : memref<16x128xf32, #tpu.memory_space<vmem>>, vector<16x128xf32>
      %c0_11 = arith.constant 0 : index
      %c0_12 = arith.constant 0 : index
      %c0_13 = arith.constant 0 : index
      %43 = vector.load %arg5[%c0_11, %c0_12, %c0_13] : memref<1x8x128xf32, #tpu.memory_space<vmem>>, vector<1x8x128xf32>
      %44 = vector.shape_cast %43 : vector<1x8x128xf32> to vector<8x128xf32>
      %c0_14 = arith.constant 0 : index
      %c0_15 = arith.constant 0 : index
      %c0_16 = arith.constant 0 : index
      %45 = vector.load %arg6[%c0_14, %c0_15, %c0_16] : memref<1x8x128xf32, #tpu.memory_space<vmem>>, vector<1x8x128xf32>
      %46 = vector.shape_cast %45 : vector<1x8x128xf32> to vector<8x128xf32>
      %cst = arith.constant dense<0.000000e+00> : vector<16x8xf32>
      %47 = tpu.matmul %42, %44, %cst {dimension_numbers = #tpu.dot_dimension_numbers<[1], [1], [0], [0], [0, 0, 1, 0], [], []>} : vector<16x128xf32>, vector<8x128xf32>, vector<16x8xf32> -> vector<16x8xf32>
      %cst_17 = arith.constant -1.000000e+30 : f32
      %48 = vector.broadcast %cst_17 : f32 to vector<16x8xf32>
      %49 = arith.select %41, %47, %48 : vector<16x8xi1>, vector<16x8xf32>
      %c0_18 = arith.constant 0 : index
      %c0_19 = arith.constant 0 : index
      %50 = vector.load %arg9[%c0_18, %c0_19] : memref<16x1xf32, #tpu.memory_space<vmem>>, vector<16x1xf32>
      %cst_20 = arith.constant dense<0xFF800000> : vector<16xf32>
      %51 = vector.multi_reduction <maximumf>, %49, %cst_20 [1] : vector<16x8xf32> to vector<16xf32>
      %52 = vector.shape_cast %51 : vector<16xf32> to vector<16x1xf32>
      %53 = arith.maximumf %50, %52 : vector<16x1xf32>
      %54 = arith.subf %50, %53 : vector<16x1xf32>
      %55 = math.exp %54 : vector<16x1xf32>
      %56 = vector.broadcast %53 : vector<16x1xf32> to vector<16x8xf32>
      %57 = arith.subf %49, %56 : vector<16x8xf32>
      %58 = math.exp %57 : vector<16x8xf32>
      %c0_21 = arith.constant 0 : index
      %c0_22 = arith.constant 0 : index
      %59 = vector.load %arg10[%c0_21, %c0_22] : memref<16x1xf32, #tpu.memory_space<vmem>>, vector<16x1xf32>
      %60 = arith.mulf %55, %59 : vector<16x1xf32>
      %cst_23 = arith.constant dense<0.000000e+00> : vector<16xf32>
      %61 = vector.multi_reduction <add>, %58, %cst_23 [1] : vector<16x8xf32> to vector<16xf32>
      %62 = vector.shape_cast %61 : vector<16xf32> to vector<16x1xf32>
      %63 = arith.addf %60, %62 : vector<16x1xf32>
      %c0_24 = arith.constant 0 : index
      %c0_25 = arith.constant 0 : index
      %64 = vector.load %arg10[%c0_24, %c0_25] : memref<16x1xf32, #tpu.memory_space<vmem>>, vector<16x1xf32>
      tpu.vector_store %arg10[%c0_24, %c0_25], %63 {strides = array<i32>} : memref<16x1xf32, #tpu.memory_space<vmem>>, vector<16x1xf32>,
      %c0_26 = arith.constant 0 : index
      %c0_27 = arith.constant 0 : index
      %65 = vector.load %arg11[%c0_26, %c0_27] : memref<16x128xf32, #tpu.memory_space<vmem>>, vector<16x128xf32>
      %66 = vector.broadcast %55 : vector<16x1xf32> to vector<16x128xf32>
      %67 = arith.mulf %66, %65 : vector<16x128xf32>
      %cst_28 = arith.constant dense<0.000000e+00> : vector<16x128xf32>
      %68 = tpu.matmul %58, %46, %cst_28 {dimension_numbers = #tpu.dot_dimension_numbers<[1], [0], [0], [1], [0, 0, 1, 1], [], []>} : vector<16x8xf32>, vector<8x128xf32>, vector<16x128xf32> -> vector<16x128xf32>
      %69 = arith.addf %67, %68 : vector<16x128xf32>
      %c0_29 = arith.constant 0 : index
      %c0_30 = arith.constant 0 : index
      %70 = vector.load %arg11[%c0_29, %c0_30] : memref<16x128xf32, #tpu.memory_space<vmem>>, vector<16x128xf32>
      tpu.vector_store %arg11[%c0_29, %c0_30], %69 {strides = array<i32>} : memref<16x128xf32, #tpu.memory_space<vmem>>, vector<16x128xf32>,
      %c0_31 = arith.constant 0 : index
      %c0_32 = arith.constant 0 : index
      %71 = vector.load %arg9[%c0_31, %c0_32] : memref<16x1xf32, #tpu.memory_space<vmem>>, vector<16x1xf32>
      tpu.vector_store %arg9[%c0_31, %c0_32], %53 {strides = array<i32>} : memref<16x1xf32, #tpu.memory_space<vmem>>, vector<16x1xf32>,
    } else {
    }
    %c0_i32_3 = arith.constant 0 : i32
    %13 = arith.cmpi eq, %arg2, %c0_i32_3 : i32
    %14 = arith.extui %13 : i1 to i32
    %c0_i32_4 = arith.constant 0 : i32
    %15 = arith.cmpi ne, %14, %c0_i32_4 : i32
    scf.if %15 {
      %16 = tpu.iota {dimensions = array<i32: 0>} : vector<8x1xi32>
      %17 = vector.broadcast %2 : i32 to vector<8x1xi32>
      %18 = arith.addi %17, %16 : vector<8x1xi32>
      %19 = vector.broadcast %1 : i32 to vector<8x1xi32>
      %20 = arith.cmpi slt, %18, %19 : vector<8x1xi32>
      %c0 = arith.constant 0 : index
      %c0_5 = arith.constant 0 : index
      %21 = vector.load %arg11[%c0, %c0_5] : memref<16x128xf32, #tpu.memory_space<vmem>>, vector<8x128xf32>
      %c0_6 = arith.constant 0 : index
      %c0_7 = arith.constant 0 : index
      %22 = vector.load %arg10[%c0_6, %c0_7] : memref<16x1xf32, #tpu.memory_space<vmem>>, vector<8x1xf32>
      %23 = tpu.reciprocal %22 {approx = true} : vector<8x1xf32> -> vector<8x1xf32>
      %24 = vector.broadcast %23 : vector<8x1xf32> to vector<8x128xf32>
      %25 = arith.mulf %21, %24 : vector<8x128xf32>
      %cst = arith.constant 0.000000e+00 : f32
      %26 = vector.shape_cast %20 : vector<8x1xi1> to vector<8x1xi1>
      %27 = vector.broadcast %26 : vector<8x1xi1> to vector<8x128xi1>
      %28 = vector.broadcast %cst : f32 to vector<8x128xf32>
      %29 = arith.select %27, %25, %28 : vector<8x128xi1>, vector<8x128xf32>
      %c0_8 = arith.constant 0 : index
      %c0_9 = arith.constant 0 : index
      %c0_10 = arith.constant 0 : index
      %30 = vector.load %arg7[%c0_8, %c0_9, %c0_10] : memref<1x8x256xf32, #tpu.memory_space<vmem>>, vector<1x8x128xf32>
      %31 = vector.shape_cast %30 : vector<1x8x128xf32> to vector<8x128xf32>
      %32 = vector.shape_cast %29 : vector<8x128xf32> to vector<1x8x128xf32>
      tpu.vector_store %arg7[%c0_8, %c0_9, %c0_10], %32 {strides = array<i32>} : memref<1x8x256xf32, #tpu.memory_space<vmem>>, vector<1x8x128xf32>,
      %c8 = arith.constant 8 : index
      %c0_11 = arith.constant 0 : index
      %33 = vector.load %arg11[%c8, %c0_11] : memref<16x128xf32, #tpu.memory_space<vmem>>, vector<8x128xf32>
      %c8_12 = arith.constant 8 : index
      %c0_13 = arith.constant 0 : index
      %34 = vector.load %arg10[%c8_12, %c0_13] : memref<16x1xf32, #tpu.memory_space<vmem>>, vector<8x1xf32>
      %35 = tpu.reciprocal %34 {approx = true} : vector<8x1xf32> -> vector<8x1xf32>
      %36 = vector.broadcast %35 : vector<8x1xf32> to vector<8x128xf32>
      %37 = arith.mulf %33, %36 : vector<8x128xf32>
      %cst_14 = arith.constant 0.000000e+00 : f32
      %38 = vector.shape_cast %20 : vector<8x1xi1> to vector<8x1xi1>
      %39 = vector.broadcast %38 : vector<8x1xi1> to vector<8x128xi1>
      %40 = vector.broadcast %cst_14 : f32 to vector<8x128xf32>
      %41 = arith.select %39, %37, %40 : vector<8x128xi1>, vector<8x128xf32>
      %c0_15 = arith.constant 0 : index
      %c0_16 = arith.constant 0 : index
      %c128 = arith.constant 128 : index
      %42 = vector.load %arg7[%c0_15, %c0_16, %c128] : memref<1x8x256xf32, #tpu.memory_space<vmem>>, vector<1x8x128xf32>
      %43 = vector.shape_cast %42 : vector<1x8x128xf32> to vector<8x128xf32>
      %44 = vector.shape_cast %41 : vector<8x128xf32> to vector<1x8x128xf32>
      tpu.vector_store %arg7[%c0_15, %c0_16, %c128], %44 {strides = array<i32>} : memref<1x8x256xf32, #tpu.memory_space<vmem>>, vector<1x8x128xf32>,
    } else {
    }
    return
  }
  func.func @transform_0(%arg0: i32, %arg1: i32, %arg2: i32, %arg3: memref<2xi32, #tpu.memory_space<smem>>) -> (i32, i32, i32) {
    %c0_i32 = arith.constant 0 : i32
    %c0_i32_0 = arith.constant 0 : i32
    return %arg0, %arg1, %c0_i32 : i32, i32, i32
  }
  func.func @transform_1(%arg0: i32, %arg1: i32, %arg2: i32, %arg3: memref<2xi32, #tpu.memory_space<smem>>) -> (i32, i32, i32) {
    %c0_i32 = arith.constant 0 : i32
    %c0_i32_0 = arith.constant 0 : i32
    return %arg0, %arg2, %c0_i32 : i32, i32, i32
  }
  func.func @transform_2(%arg0: i32, %arg1: i32, %arg2: i32, %arg3: memref<2xi32, #tpu.memory_space<smem>>) -> (i32, i32, i32) {
    %c0_i32 = arith.constant 0 : i32
    %c0_i32_0 = arith.constant 0 : i32
    return %arg0, %arg2, %c0_i32 : i32, i32, i32
  }
  func.func @transform_3(%arg0: i32, %arg1: i32, %arg2: i32, %arg3: memref<2xi32, #tpu.memory_space<smem>>) -> (i32, i32, i32) {
    %c0_i32 = arith.constant 0 : i32
    %c0_i32_0 = arith.constant 0 : i32
    return %arg0, %arg1, %c0_i32 : i32, i32, i32
  }
}

</mosaic_0001>

<llo_original>
// kernel: tpu_custom_call.1
$region0: #{tpu_custom_call.1}
  #allocation0 [shape = 'u32[]', space=smem, size = 0x4, offset = 0x4, fixed_abs, tag = 'smem constant byte address 0x4 - core index']
  #allocation1 [shape = 'u32[144,128]{1,0:T(1,128)}', space=vmem, size = 0x12000, scoped, tag = 'internal scratch']
  #allocation2 [shape = 'f32[16,128]{1,0:T(8,128)}', space=vmem, size = 0x2000, scoped, tag = 'scratch operand']
  #allocation3 [shape = 'f32[16,1]{1,0:T(8,128)}', space=vmem, size = 0x2000, scoped, tag = 'scratch operand']
  #allocation4 [shape = 'f32[16,1]{1,0:T(8,128)}', space=vmem, size = 0x2000, scoped, tag = 'scratch operand']
  #allocation5 [shape = 'f32[16,128]{1,0:T(8,128)}', space=vmem, size = 0x2000, scoped, tag = 'scratch operand']
  #allocation6 [shape = 's32[1]{0}', space=sflag, size = 0x4, scoped, tag = 'scoped memory for tpu_custom_call.1']
  #allocation7 [shape = 'u8[512]{0}', space=smem, size = 0x200, scoped, tag = 'prefetched SMEM operand 0']
  %s0 = inlined_call_operand.hbm [shape: s32[2], index: 0, kind: input, shape index: {}]
  %s1 = inlined_call_operand.hbm [shape: f32[2,8,256], index: 1, kind: input, shape index: {}]
  %s2 = inlined_call_operand.hbm [shape: f32[2,8,128], index: 2, kind: input, shape index: {}]
  %s3 = inlined_call_operand.hbm [shape: f32[2,8,128], index: 3, kind: input, shape index: {}]
  %s4 = inlined_call_operand.hbm [shape: f32[2,8,256], index: 4, kind: output, shape index: {}]
  %s5 = sld [smem:[#allocation0]]
  $region69: #{tpu_custom_call.1} parent=0
    _
  %s7 = ssub.s32 1, %s5
  %s8 = scalar_select 0, %s7, %s5
  %10 = dma.hbm_to_smem %s0, 16, [#allocation7], [#allocation6]
  %11 = dma.done [#allocation6], 16
  %12 = sfence
  $region1: #{tpu_custom_call.1} parent=0
    #allocation8 [shape = 'u8[16384]{0}', space=vmem, size = 0x4000, scoped, tag = 'input window, operand 1']
    #allocation9 [shape = 's32[2]{0}', space=sflag, size = 0x8, scoped, tag = 'scoped memory for tpu_custom_call.1']
    #allocation10 [shape = 's32[2]{0}', space=sflag, size = 0x8, scoped, tag = 'scoped memory for tpu_custom_call.1']
    #allocation11 [shape = 'u8[8192]{0}', space=vmem, size = 0x2000, scoped, tag = 'input window, operand 2']
    #allocation12 [shape = 's32[2]{0}', space=sflag, size = 0x8, scoped, tag = 'scoped memory for tpu_custom_call.1']
    #allocation13 [shape = 'u8[8192]{0}', space=vmem, size = 0x2000, scoped, tag = 'input window, operand 3']
    #allocation14 [shape = 'u8[16384]{0}', space=vmem, size = 0x4000, scoped, tag = 'output window, operand 0']
    %13 = vsyncpa [#allocation9], 0
    %s14 = scalar_lea.sflag [#allocation9], 1
    %15 = vsyncpa %s14, 0
    %16 = vsyncpa [#allocation12], 0
    %s17 = scalar_lea.sflag [#allocation12], 1
    %18 = vsyncpa %s17, 0
    %19 = vsyncpa [#allocation10], 0
    %s20 = scalar_lea.sflag [#allocation10], 1
    %21 = vsyncpa %s20, 0
    loop: start=0, step=1, limit=4
    $region2: #{tpu_custom_call.1} parent=1 // loop_pre_header
      _
    $region3: #{tpu_custom_call.1} parent=1 // loop_header
      %s23 = sphi 0, %s27
      %p24 = scmp.ge.s32.totalorder %s23, 4
      %s30 = sphi 0, %s49
      %s31 = sphi 0, %s45
      %s32 = sphi 0, %s41
      %s33 = sphi 0, %s30
      %s34 = sphi 0, %s31
      %s35 = sphi 0, %s32
      %s36 = sphi 0, %s33
      %s37 = sphi 0, %s34
      %s38 = sphi 0, %s35
      %s54 = sphi 0, %s56
      %s57 = sphi 0, %s54
      %s58 = sphi 0, %s57
      %s74 = sphi 0, %s58
      %s82 = sphi 0, %s84
      %s85 = sphi 0, %s82
      %s86 = sphi 0, %s85
      %s102 = sphi 0, %s86
      %s110 = sphi 0, %s112
      %s113 = sphi 0, %s110
      %s114 = sphi 0, %s113
      %s130 = sphi 0, %s114
      %s138 = sphi 0, %s140
      %s141 = sphi 0, %s138
      %s142 = sphi 0, %s141
      %s158 = sphi 0, %s142
    $region4: #{tpu_custom_call.1} parent=1 // loop_header_branch
      %26 = sbr.rel (%p24) target = $region8
    $region5: #{tpu_custom_call.1} parent=1 // loop_body
      %s28 = ssub.s32 %s23, 1
      %s29 = ssub.s32 %s23, 2
      %s39 = sadd.s32 1, %s32
      %p40 = scmp.ge.s32.totalorder %s39, 1
      %s41 = scalar_select %p40, 0, %s39
      %s42 = sadd.s32 1, %s31
      %s43 = scalar_select %p40, %s42, %s31
      %p44 = scmp.ge.s32.totalorder %s43, 1
      %s45 = scalar_select %p44, 0, %s43
      %s46 = sadd.s32 1, %s30
      %s47 = scalar_select %p44, %s46, %s30
      %p48 = scmp.ge.s32.totalorder %s47, 2
      %s49 = scalar_select %p48, 0, %s47
      %s50 = ssub.s32 %s30, %s49
      %s51 = ssub.s32 %s31, %s45
      %s52 = sor.u32 %s50, %s51
      %p53 = scmp.eq.s32.totalorder %s52, 0
      %s55 = sadd.s32 %s54, 1
      %s56 = scalar_select %p53, %s54, %s55
      %p59 = pneg %p53
      %p60 = scmp.eq.s32.totalorder %s23, 1
      %p61 = por %p59, %p60
      %p62 = scmp.ne.s32.totalorder %s54, %s57
      %p63 = scmp.eq.s32.totalorder %s23, 0
      %p64 = por %p62, %p63
      %p65 = scmp.ne.s32.totalorder %s54, %s57
      %p66 = scmp.eq.s32.totalorder %s28, 1
      %p67 = por %p65, %p66
      %p68 = scmp.ne.s32.totalorder %s57, %s58
      %p69 = scmp.eq.s32.totalorder %s28, 0
      %p70 = por %p68, %p69
      %p71 = scmp.ne.s32.totalorder %s57, %s58
      %p72 = scmp.eq.s32.totalorder %s29, 1
      %p73 = por %p71, %p72
      %p75 = scmp.ne.s32.totalorder %s58, %s74
      %p76 = scmp.eq.s32.totalorder %s29, 0
      %p77 = por %p75, %p76
      %s78 = ssub.s32 %s30, %s49
      %s79 = ssub.s32 %s32, %s41
      %s80 = sor.u32 %s78, %s79
      %p81 = scmp.eq.s32.totalorder %s80, 0
      %s83 = sadd.s32 %s82, 1
      %s84 = scalar_select %p81, %s82, %s83
      %p87 = pneg %p81
      %p88 = scmp.eq.s32.totalorder %s23, 1
      %p89 = por %p87, %p88
      %p90 = scmp.ne.s32.totalorder %s82, %s85
      %p91 = scmp.eq.s32.totalorder %s23, 0
      %p92 = por %p90, %p91
      %p93 = scmp.ne.s32.totalorder %s82, %s85
      %p94 = scmp.eq.s32.totalorder %s28, 1
      %p95 = por %p93, %p94
      %p96 = scmp.ne.s32.totalorder %s85, %s86
      %p97 = scmp.eq.s32.totalorder %s28, 0
      %p98 = por %p96, %p97
      %p99 = scmp.ne.s32.totalorder %s85, %s86
      %p100 = scmp.eq.s32.totalorder %s29, 1
      %p101 = por %p99, %p100
      %p103 = scmp.ne.s32.totalorder %s86, %s102
      %p104 = scmp.eq.s32.totalorder %s29, 0
      %p105 = por %p103, %p104
      %s106 = ssub.s32 %s30, %s49
      %s107 = ssub.s32 %s32, %s41
      %s108 = sor.u32 %s106, %s107
      %p109 = scmp.eq.s32.totalorder %s108, 0
      %s111 = sadd.s32 %s110, 1
      %s112 = scalar_select %p109, %s110, %s111
      %p115 = pneg %p109
      %p116 = scmp.eq.s32.totalorder %s23, 1
      %p117 = por %p115, %p116
      %p118 = scmp.ne.s32.totalorder %s110, %s113
      %p119 = scmp.eq.s32.totalorder %s23, 0
      %p120 = por %p118, %p119
      %p121 = scmp.ne.s32.totalorder %s110, %s113
      %p122 = scmp.eq.s32.totalorder %s28, 1
      %p123 = por %p121, %p122
      %p124 = scmp.ne.s32.totalorder %s113, %s114
      %p125 = scmp.eq.s32.totalorder %s28, 0
      %p126 = por %p124, %p125
      %p127 = scmp.ne.s32.totalorder %s113, %s114
      %p128 = scmp.eq.s32.totalorder %s29, 1
      %p129 = por %p127, %p128
      %p131 = scmp.ne.s32.totalorder %s114, %s130
      %p132 = scmp.eq.s32.totalorder %s29, 0
      %p133 = por %p131, %p132
      %s134 = ssub.s32 %s30, %s49
      %s135 = ssub.s32 %s31, %s45
      %s136 = sor.u32 %s134, %s135
      %p137 = scmp.eq.s32.totalorder %s136, 0
      %s139 = sadd.s32 %s138, 1
      %s140 = scalar_select %p137, %s138, %s139
      %p143 = pneg %p137
      %p144 = scmp.eq.s32.totalorder %s23, 1
      %p145 = por %p143, %p144
      %p146 = scmp.ne.s32.totalorder %s138, %s141
      %p147 = scmp.eq.s32.totalorder %s23, 0
      %p148 = por %p146, %p147
      %p149 = scmp.ne.s32.totalorder %s138, %s141
      %p150 = scmp.eq.s32.totalorder %s28, 1
      %p151 = por %p149, %p150
      %p152 = scmp.ne.s32.totalorder %s141, %s142
      %p153 = scmp.eq.s32.totalorder %s28, 0
      %p154 = por %p152, %p153
      %p155 = scmp.ne.s32.totalorder %s141, %s142
      %p156 = scmp.eq.s32.totalorder %s29, 1
      %p157 = por %p155, %p156
      %p159 = scmp.ne.s32.totalorder %s142, %s158
      %p160 = scmp.eq.s32.totalorder %s29, 0
      %p161 = por %p159, %p160
      %p162 = scmp.le.s32.totalorder 1, %s23
      %p163 = scmp.lt.s32.totalorder %s23, 3
      %p164 = pnand %p162, %p163
      %p165 = pneg %p164
      // Predicated region
      $region9: #{tpu_custom_call.1} parent=5 // pred_check
        _
      $region10: #{tpu_custom_call.1} parent=5 // pred_check_branch
        %167 = sbr.rel (%p164) target = $region12
      $region11: #{tpu_custom_call.1} parent=5 // pred_region
        %s168 = ssub.s32 %s23, 1
      $region12: #{tpu_custom_call.1} parent=5 // pred_fallthru
        _
      %p169 = scmp.lt.s32.totalorder %s23, 2
      // Predicated region
      $region13: #{tpu_custom_call.1} parent=5 // pred_check
        %p170 = pneg %p169
      $region14: #{tpu_custom_call.1} parent=5 // pred_check_branch
        %172 = sbr.rel (%p170) target = $region16
      $region15: #{tpu_custom_call.1} parent=5 // pred_region
        // Predicated region
        $region17: #{tpu_custom_call.1} parent=15 // pred_check
          %p173 = pneg %p64
        $region18: #{tpu_custom_call.1} parent=15 // pred_check_branch
          %175 = sbr.rel (%p173) target = $region20
        $region19: #{tpu_custom_call.1} parent=15 // pred_region
          %s176 = sand.u32 %s54, 1
          %s177 = scalar_lea.sflag [#allocation9], %s176
          %s178 = sand.u32 %s54, 1
          %s179 = smul.addr %s178, 16
          %s180 = scalar_lea.vmem [#allocation8], %s179
          %s182 = ssub.s32 256, 256
          %183 = vsyncadd %s177, %s182
          %s184 = smul.addr %s31, 2
          %s185 = smul.addr %s30, 2
          %s186 = sadd.s32 %s184, %s185
          %s187 = smul.addr %s186, 128
          %s188 = scalar_lea.hbm %s1, %s187
          %s190 = sshll.u32 %s180, 4
          %s191 = int_to_ptr.vmem [resolvable:$true] %s190
          %193 = dma.hbm_to_vmem [thread:$0]  %s188, 256, %s191, %s177
        $region20: #{tpu_custom_call.1} parent=15 // pred_fallthru
          _
        // Predicated region
        $region21: #{tpu_custom_call.1} parent=15 // pred_check
          %p194 = pneg %p92
        $region22: #{tpu_custom_call.1} parent=15 // pred_check_branch
          %196 = sbr.rel (%p194) target = $region24
        $region23: #{tpu_custom_call.1} parent=15 // pred_region
          %s197 = sand.u32 %s23, 1
          %s198 = scalar_lea.sflag [#allocation12], %s197
          %s199 = sand.u32 %s82, 1
          %s200 = smul.addr %s199, 8
          %s201 = scalar_lea.vmem [#allocation11], %s200
          %s203 = ssub.s32 128, 128
          %204 = vsyncadd %s198, %s203
          %s205 = sadd.s32 %s32, %s30
          %s206 = smul.addr %s205, 128
          %s207 = scalar_lea.hbm %s2, %s206
          %s209 = sshll.u32 %s201, 4
          %s210 = int_to_ptr.vmem [resolvable:$true] %s209
          %212 = dma.hbm_to_vmem [thread:$0]  %s207, 128, %s210, %s198
        $region24: #{tpu_custom_call.1} parent=15 // pred_fallthru
          _
        // Predicated region
        $region25: #{tpu_custom_call.1} parent=15 // pred_check
          %p213 = pneg %p120
        $region26: #{tpu_custom_call.1} parent=15 // pred_check_branch
          %215 = sbr.rel (%p213) target = $region28
        $region27: #{tpu_custom_call.1} parent=15 // pred_region
          %s216 = sand.u32 %s23, 1
          %s217 = scalar_lea.sflag [#allocation12], %s216
          %s218 = sand.u32 %s110, 1
          %s219 = smul.addr %s218, 8
          %s220 = scalar_lea.vmem [#allocation13], %s219
          %s222 = ssub.s32 128, 128
          %223 = vsyncadd %s217, %s222
          %s224 = sadd.s32 %s32, %s30
          %s225 = smul.addr %s224, 128
          %s226 = scalar_lea.hbm %s3, %s225
          %s228 = sshll.u32 %s220, 4
          %s229 = int_to_ptr.vmem [resolvable:$true] %s228
          %231 = dma.hbm_to_vmem [thread:$0]  %s226, 128, %s229, %s217
        $region28: #{tpu_custom_call.1} parent=15 // pred_fallthru
          _
      $region16: #{tpu_custom_call.1} parent=5 // pred_fallthru
        _
      %p232 = scmp.le.s32.totalorder 1, %s23
      %p233 = scmp.lt.s32.totalorder %s23, 3
      %p234 = pnand %p232, %p233
      %p235 = pneg %p234
      // Predicated region
      $region29: #{tpu_custom_call.1} parent=5 // pred_check
        _
      $region30: #{tpu_custom_call.1} parent=5 // pred_check_branch
        %237 = sbr.rel (%p234) target = $region32
      $region31: #{tpu_custom_call.1} parent=5 // pred_region
        %s238 = ssub.s32 %s23, 1
        %s239 = sand.u32 %s57, 1
        %s240 = scalar_lea.sflag [#allocation9], %s239
        %s241 = sand.u32 %s57, 1
        %s242 = smul.addr %s241, 16
        %s243 = scalar_lea.vmem [#allocation8], %s242
        // Predicated region
        $region33: #{tpu_custom_call.1} parent=31 // pred_check
          %p244 = pneg %p70
        $region34: #{tpu_custom_call.1} parent=31 // pred_check_branch
          %246 = sbr.rel (%p244) target = $region36
        $region35: #{tpu_custom_call.1} parent=31 // pred_region
          %247 = dma.done %s240, 256
        $region36: #{tpu_custom_call.1} parent=31 // pred_fallthru
          _
        %s248 = sand.u32 %s28, 1
        %s249 = scalar_lea.sflag [#allocation12], %s248
        %s250 = sand.u32 %s85, 1
        %s251 = smul.addr %s250, 8
        %s252 = scalar_lea.vmem [#allocation11], %s251
        // Predicated region
        $region37: #{tpu_custom_call.1} parent=31 // pred_check
          %p253 = pneg %p98
        $region38: #{tpu_custom_call.1} parent=31 // pred_check_branch
          %255 = sbr.rel (%p253) target = $region40
        $region39: #{tpu_custom_call.1} parent=31 // pred_region
          %256 = dma.done %s249, 128
        $region40: #{tpu_custom_call.1} parent=31 // pred_fallthru
          _
        %s257 = sand.u32 %s28, 1
        %s258 = scalar_lea.sflag [#allocation12], %s257
        %s259 = sand.u32 %s113, 1
        %s260 = smul.addr %s259, 8
        %s261 = scalar_lea.vmem [#allocation13], %s260
        // Predicated region
        $region41: #{tpu_custom_call.1} parent=31 // pred_check
          %p262 = pneg %p126
        $region42: #{tpu_custom_call.1} parent=31 // pred_check_branch
          %264 = sbr.rel (%p262) target = $region44
        $region43: #{tpu_custom_call.1} parent=31 // pred_region
          %265 = dma.done %s258, 128
        $region44: #{tpu_custom_call.1} parent=31 // pred_fallthru
          _
        %s266 = sand.u32 %s57, 1
        %s267 = scalar_lea.sflag [#allocation9], %s266
        %s268 = sand.u32 %s57, 1
        %s269 = smul.addr %s268, 16
        %s270 = scalar_lea.vmem [#allocation8], %s269
        %p271 = pneg %p70
        %p272 = pneg %p67
        %s273 = sand.u32 %s28, 1
        %s274 = scalar_lea.sflag [#allocation12], %s273
        %s275 = sand.u32 %s85, 1
        %s276 = smul.addr %s275, 8
        %s277 = scalar_lea.vmem [#allocation11], %s276
        %p278 = pneg %p98
        %p279 = pneg %p95
        %s280 = sand.u32 %s28, 1
        %s281 = scalar_lea.sflag [#allocation12], %s280
        %s282 = sand.u32 %s113, 1
        %s283 = smul.addr %s282, 8
        %s284 = scalar_lea.vmem [#allocation13], %s283
        %p285 = pneg %p126
        %p286 = pneg %p123
        %p287 = pneg %p154
        %p288 = pneg %p151
        %s289 = sand.u32 %s141, 1
        %s290 = scalar_lea.sflag [#allocation10], %s289
        %s291 = sand.u32 %s141, 1
        %s292 = smul.addr %s291, 16
        %s293 = scalar_lea.vmem [#allocation14], %s292
        %s294 = sld [smem:[#allocation7 + %s33]]
        %s295 = smul.u32 %s34, 8
        %s296 = smul.u32 %s35, 8
        %p297 = scmp.eq.s32.totalorder %s35, 0
        // Predicated region
        $region45: #{tpu_custom_call.1} parent=31 // pred_check
          %p298 = pneg %p297
        $region46: #{tpu_custom_call.1} parent=31 // pred_check_branch
          %300 = sbr.rel (%p298) target = $region48
        $region47: #{tpu_custom_call.1} parent=31 // pred_region
          %vm301 = vcmask 7168
          %302 = vst.msk [vmem:[#allocation3] sm:$0xff] %vm301, -inf
          %303 = vst.msk [vmem:[#allocation3 + $0x8] sm:$0xff] %vm301, -inf
          %304 = vst.msk [vmem:[#allocation4] sm:$0xff] %vm301, 0.0
          %305 = vst.msk [vmem:[#allocation4 + $0x8] sm:$0xff] %vm301, 0.0
          %306 = vst [vmem:[#allocation5] sm:$0xff] 0.0
          %307 = vst [vmem:[#allocation5 + $0x8] sm:$0xff] 0.0
          %v308 = vld [vmem:[%s243] sm:$0xff]
          %v309 = vmul.f32 %v308, 0.088388346
          %310 = vst [vmem:[#allocation2] sm:$0xff] %v309
          %v311 = vld [vmem:[%s243 + $0x8] sm:$0xff]
          %v312 = vmul.f32 %v311, 0.088388346
          %313 = vst [vmem:[#allocation2 + $0x8] sm:$0xff] %v312
        $region48: #{tpu_custom_call.1} parent=31 // pred_fallthru
          _
        %p314 = scmp.lt.s32.totalorder %s296, %s294
        %s315 = sadd.s32 %s295, 7
        %p316 = scmp.le.s32.totalorder %s296, %s315
        %p317 = pnand %p314, %p316
        %p318 = pneg %p317
        // Predicated region
        $region49: #{tpu_custom_call.1} parent=31 // pred_check
          _
        $region50: #{tpu_custom_call.1} parent=31 // pred_check_branch
          %320 = sbr.rel (%p317) target = $region52
        $region51: #{tpu_custom_call.1} parent=31 // pred_region
          %v321 = vlaneseq
          %v322 = vand.u32 %v321, 127
          %v323 = vstv %s296
          %v324 = vadd.s32 %v323, %v322
          %v325 = vstv %s294
          %vm326 = vcmp.lt.s32.totalorder %v324, %v325
          %v327 = vlaneseq
          %v328 = vshrl.u32 %v327, 7
          %v329 = vadd.s32 %v328, 8
          %vm330 = vcmp.lt.s32.totalorder %v328, 0
          %v331 = vsub.s32 0, %v328
          %v332 = vsel %vm330, %v331, %v328
          %v333 = vshrl.u32 %v332, 3
          %v334 = vand.u32 %v332, 7
          %v335 = vsub.s32 0, %v334
          %v336 = vsel %vm330, %v335, %v334
          %vm337 = vcmp.lt.s32.totalorder %v329, 0
          %v338 = vsub.s32 0, %v329
          %v339 = vsel %vm337, %v338, %v329
          %v340 = vshrl.u32 %v339, 3
          %v341 = vand.u32 %v339, 7
          %v342 = vsub.s32 0, %v341
          %v343 = vsel %vm337, %v342, %v341
          %vm344 = vcmp.ne.s32.totalorder %v336, 0
          %vm345 = vcmp.ne.s32.totalorder %v343, 0
          %vm346 = vcmp.lt.s32.totalorder %v336, 0
          %vm347 = vcmp.lt.s32.totalorder %v343, 0
          %vm348 = vmand %vm346, %vm344
          %vm349 = vmand %vm347, %vm345
          %v350 = vadd.s32 %v336, 8
          %v351 = vadd.s32 %v343, 8
          %v352 = vsel %vm348, %v350, %v336
          %v353 = vsel %vm349, %v351, %v343
          %v354 = vstv %s295
          %v355 = vadd.s32 %v354, %v352
          %v356 = vadd.s32 %v354, %v353
          %vm357 = vcmp.le.s32.totalorder %v324, %v355
          %vm358 = vcmp.le.s32.totalorder %v324, %v356
          %vm359 = vmand %vm326, %vm357
          %vm360 = vmand %vm326, %vm358
          %v361 = vld [vmem:[#allocation2] sm:$0xff]
          %v362 = vld [vmem:[#allocation2 + $0x8] sm:$0xff]
          %v363 = vld [vmem:[%s252] sm:$0xff]
          %v364 = vld [vmem:[%s261] sm:$0xff]
          %365 = vmatprep.subr.mxu0 0.0
          %366 = vmatpush1.xpose.msra.mxu0 %v363
          %367 = vmatprep.subr.mxu0 0.0
          %368 = vmatpush1.xpose.msra.mxu0 0.0
          %369 = vmatprep.subr.mxu0 0.0
          %370 = vmatpush1.xpose.msra.mxu0 0.0
          %371 = vmatprep.subr.mxu0 0.0
          %372 = vmatpush1.xpose.msra.mxu0 0.0
          %373 = vmatprep.subr.mxu0 0.0
          %374 = vmatpush1.xpose.msra.mxu0 0.0
          %375 = vmatprep.subr.mxu0 0.0
          %376 = vmatpush1.xpose.msra.mxu0 0.0
          %377 = vmatprep.subr.mxu0 0.0
          %378 = vmatpush1.xpose.msra.mxu0 0.0
          %379 = vmatprep.subr.mxu0 0.0
          %380 = vmatpush1.xpose.msra.mxu0 0.0
          %381 = vmatprep.subr.mxu0 0.0
          %382 = vmatpush1.xpose.msra.mxu0 0.0
          %383 = vmatprep.subr.mxu0 0.0
          %384 = vmatpush1.xpose.msra.mxu0 0.0
          %385 = vmatprep.subr.mxu0 0.0
          %386 = vmatpush1.xpose.msra.mxu0 0.0
          %387 = vmatprep.subr.mxu0 0.0
          %388 = vmatpush1.xpose.msra.mxu0 0.0
          %389 = vmatprep.subr.mxu0 0.0
          %390 = vmatpush1.xpose.msra.mxu0 0.0
          %391 = vmatprep.subr.mxu0 0.0
          %392 = vmatpush1.xpose.msra.mxu0 0.0
          %393 = vmatprep.subr.mxu0 0.0
          %394 = vmatpush1.xpose.msra.mxu0 0.0
          %395 = vmatprep.subr.mxu0 0.0
          %396 = vmatpush1.xpose.msra.mxu0 0.0
          %397 = vmatprep.subr.mxu0 0.0
          %398 = vmatpush1.xpose.msra.mxu0 0.0
          %399 = vmatprep.subr.mxu0 0.0
          %400 = vmatpush1.xpose.msra.mxu0 0.0
          %401 = vmatprep.subr.mxu0 0.0
          %402 = vmatpush1.xpose.msra.mxu0 0.0
          %403 = vmatprep.subr.mxu0 0.0
          %404 = vmatpush1.xpose.msra.mxu0 0.0
          %405 = vmatprep.subr.mxu0 0.0
          %406 = vmatpush1.xpose.msra.mxu0 0.0
          %407 = vmatprep.subr.mxu0 0.0
          %408 = vmatpush1.xpose.msra.mxu0 0.0
          %409 = vmatprep.subr.mxu0 0.0
          %410 = vmatpush1.xpose.msra.mxu0 0.0
          %411 = vmatprep.subr.mxu0 0.0
          %412 = vmatpush1.xpose.msra.mxu0 0.0
          %413 = vmatprep.subr.mxu0 0.0
          %414 = vmatpush1.xpose.msra.mxu0 0.0
          %415 = vmatprep.subr.mxu0 0.0
          %416 = vmatpush1.xpose.msra.mxu0 0.0
          %417 = vmatprep.subr.mxu0 0.0
          %418 = vmatpush1.xpose.msra.mxu0 0.0
          %419 = vmatprep.subr.mxu0 0.0
          %420 = vmatpush1.xpose.msra.mxu0 0.0
          %421 = vmatprep.subr.mxu0 0.0
          %422 = vmatpush1.xpose.msra.mxu0 0.0
          %423 = vmatprep.subr.mxu0 0.0
          %424 = vmatpush1.xpose.msra.mxu0 0.0
          %425 = vmatprep.subr.mxu0 0.0
          %426 = vmatpush1.xpose.msra.mxu0 0.0
          %427 = vmatprep.subr.mxu0 0.0
          %428 = vmatpush1.xpose.msra.mxu0 0.0
          %429 = vmatprep.mubr.f32.mxu0 0.0
          %430 = vmatmul.mubr.f32.gmra.mrb[0].mxu0 %v361
          %v431 = vpop.f32.mrb[0].mxu0
          %v432 = vadd.f32 0.0, %v431
          %v433 = vpop.f32.mrb[0].mxu0
          %434 = vmatprep.mubr.f32.mxu0 0.0
          %435 = vmatmul.mubr.f32.gmra.mrb[0].mxu0 %v362
          %v436 = vpop.f32.mrb[0].mxu0
          %v437 = vadd.f32 0.0, %v436
          %v438 = vpop.f32.mrb[0].mxu0
          %439 = vdwg.mxu0
          %v440 = vsel %vm359, %v432, -1e+30
          %v441 = vsel %vm360, %v437, -1e+30
          %v442 = vld [vmem:[#allocation3] sm:$0xff]
          %v443 = vld [vmem:[#allocation3 + $0x8] sm:$0xff]
          %vm444 = vcmask 64512
          %v445 = vsel %vm444, %v440, -inf
          %446 = vmax.xlane.f32.xlu0 %v445
          %v447 = vpop.xlane.xlu0 %446
          %v448 = vsel %vm444, %v441, -inf
          %449 = vmax.xlane.f32.xlu0 %v448
          %v450 = vpop.xlane.xlu0 %449
          %v451 = vmax.f32 %v442, %v447
          %v452 = vmax.f32 %v443, %v450
          %v453 = vsub.f32 %v442, %v451
          %v454 = vsub.f32 %v443, %v452
          %v455 = vmul.f32 %v453, 1.442695
          %v456 = vpow.pop %v455
          %v457 = vmul.f32 %v454, 1.442695
          %v458 = vpow.pop %v457
          %460 = vset.pattern.permute.xlu0 0
          %461 = vperm.xlu0 %460, %v451
          %v462 = vpop.permute.xlu0 %461
          %465 = vset.pattern.permute.xlu0 0
          %466 = vperm.xlu0 %465, %v452
          %v467 = vpop.permute.xlu0 %466
          %v469 = vsub.f32 %v440, %v462
          %v470 = vsub.f32 %v441, %v467
          %v471 = vmul.f32 %v469, 1.442695
          %v472 = vpow.pop %v471
          %v473 = vmul.f32 %v470, 1.442695
          %v474 = vpow.pop %v473
          %v475 = vld [vmem:[#allocation4] sm:$0xff]
          %v476 = vld [vmem:[#allocation4 + $0x8] sm:$0xff]
          %v477 = vmul.f32 %v456, %v475
          %v478 = vmul.f32 %v458, %v476
          %v479 = vsel %vm444, %v472, 0.0
          %480 = vadd.xlane.f32.xlu0 %v479
          %v481 = vpop.xlane.xlu0 %480
          %v482 = vsel %vm444, %v474, 0.0
          %483 = vadd.xlane.f32.xlu0 %v482
          %v484 = vpop.xlane.xlu0 %483
          %v485 = vadd.f32 %v477, %v481
          %v486 = vadd.f32 %v478, %v484
          %vm487 = vcmask 7168
          %488 = vst.msk [vmem:[#allocation4] sm:$0xff] %vm487, %v485
          %489 = vst.msk [vmem:[#allocation4 + $0x8] sm:$0xff] %vm487, %v486
          %v490 = vld [vmem:[#allocation5] sm:$0xff]
          %v491 = vld [vmem:[#allocation5 + $0x8] sm:$0xff]
          %493 = vset.pattern.permute.xlu0 0
          %494 = vperm.xlu0 %493, %v456
          %v495 = vpop.permute.xlu0 %494
          %498 = vset.pattern.permute.xlu0 0
          %499 = vperm.xlu0 %498, %v458
          %v500 = vpop.permute.xlu0 %499
          %v502 = vmul.f32 %v495, %v490
          %v503 = vmul.f32 %v500, %v491
          %v505 = vsel %vm444, %v472, 0
          %v508 = vsel %vm444, %v474, 0
          %510 = vmatprep.subr.mxu0 0.0
          %511 = vmatpush1.msra.mxu0 %v364
          %512 = vmatprep.subr.mxu0 0.0
          %513 = vmatpush1.msra.mxu0 0.0
          %514 = vmatprep.subr.mxu0 0.0
          %515 = vmatpush1.msra.mxu0 0.0
          %516 = vmatprep.subr.mxu0 0.0
          %517 = vmatpush1.msra.mxu0 0.0
          %518 = vmatprep.subr.mxu0 0.0
          %519 = vmatpush1.msra.mxu0 0.0
          %520 = vmatprep.subr.mxu0 0.0
          %521 = vmatpush1.msra.mxu0 0.0
          %522 = vmatprep.subr.mxu0 0.0
          %523 = vmatpush1.msra.mxu0 0.0
          %524 = vmatprep.subr.mxu0 0.0
          %525 = vmatpush1.msra.mxu0 0.0
          %526 = vmatprep.subr.mxu0 0.0
          %527 = vmatpush1.msra.mxu0 0.0
          %528 = vmatprep.subr.mxu0 0.0
          %529 = vmatpush1.msra.mxu0 0.0
          %530 = vmatprep.subr.mxu0 0.0
          %531 = vmatpush1.msra.mxu0 0.0
          %532 = vmatprep.subr.mxu0 0.0
          %533 = vmatpush1.msra.mxu0 0.0
          %534 = vmatprep.subr.mxu0 0.0
          %535 = vmatpush1.msra.mxu0 0.0
          %536 = vmatprep.subr.mxu0 0.0
          %537 = vmatpush1.msra.mxu0 0.0
          %538 = vmatprep.subr.mxu0 0.0
          %539 = vmatpush1.msra.mxu0 0.0
          %540 = vmatprep.subr.mxu0 0.0
          %541 = vmatpush1.msra.mxu0 0.0
          %542 = vmatprep.subr.mxu0 0.0
          %543 = vmatpush1.msra.mxu0 0.0
          %544 = vmatprep.subr.mxu0 0.0
          %545 = vmatpush1.msra.mxu0 0.0
          %546 = vmatprep.subr.mxu0 0.0
          %547 = vmatpush1.msra.mxu0 0.0
          %548 = vmatprep.subr.mxu0 0.0
          %549 = vmatpush1.msra.mxu0 0.0
          %550 = vmatprep.subr.mxu0 0.0
          %551 = vmatpush1.msra.mxu0 0.0
          %552 = vmatprep.subr.mxu0 0.0
          %553 = vmatpush1.msra.mxu0 0.0
          %554 = vmatprep.subr.mxu0 0.0
          %555 = vmatpush1.msra.mxu0 0.0
          %556 = vmatprep.subr.mxu0 0.0
          %557 = vmatpush1.msra.mxu0 0.0
          %558 = vmatprep.subr.mxu0 0.0
          %559 = vmatpush1.msra.mxu0 0.0
          %560 = vmatprep.subr.mxu0 0.0
          %561 = vmatpush1.msra.mxu0 0.0
          %562 = vmatprep.subr.mxu0 0.0
          %563 = vmatpush1.msra.mxu0 0.0
          %564 = vmatprep.subr.mxu0 0.0
          %565 = vmatpush1.msra.mxu0 0.0
          %566 = vmatprep.subr.mxu0 0.0
          %567 = vmatpush1.msra.mxu0 0.0
          %568 = vmatprep.subr.mxu0 0.0
          %569 = vmatpush1.msra.mxu0 0.0
          %570 = vmatprep.subr.mxu0 0.0
          %571 = vmatpush1.msra.mxu0 0.0
          %572 = vmatprep.subr.mxu0 0.0
          %573 = vmatpush1.msra.mxu0 0.0
          %574 = vmatprep.mubr.f32.mxu0 0.0
          %575 = vmatmul.mubr.f32.gmra.mrb[0].mxu0 %v505
          %v576 = vpop.f32.mrb[0].mxu0
          %v577 = vadd.f32 0.0, %v576
          %v578 = vpop.f32.mrb[0].mxu0
          %579 = vmatprep.mubr.f32.mxu0 0.0
          %580 = vmatmul.mubr.f32.gmra.mrb[0].mxu0 %v508
          %v581 = vpop.f32.mrb[0].mxu0
          %v582 = vadd.f32 0.0, %v581
          %v583 = vpop.f32.mrb[0].mxu0
          %584 = vdwg.mxu0
          %v585 = vadd.f32 %v502, %v577
          %v586 = vadd.f32 %v503, %v582
          %587 = vst [vmem:[#allocation5] sm:$0xff] %v585
          %588 = vst [vmem:[#allocation5 + $0x8] sm:$0xff] %v586
          %589 = vst.msk [vmem:[#allocation3] sm:$0xff] %vm487, %v451
          %590 = vst.msk [vmem:[#allocation3 + $0x8] sm:$0xff] %vm487, %v452
        $region52: #{tpu_custom_call.1} parent=31 // pred_fallthru
          _
        // Predicated region
        $region53: #{tpu_custom_call.1} parent=31 // pred_check
          %p591 = pneg %p297
        $region54: #{tpu_custom_call.1} parent=31 // pred_check_branch
          %593 = sbr.rel (%p591) target = $region56
        $region55: #{tpu_custom_call.1} parent=31 // pred_region
          %v594 = vlaneseq
          %v595 = vshrl.u32 %v594, 7
          %v596 = vstv %s295
          %v597 = vadd.s32 %v596, %v595
          %v598 = vstv %s294
          %vm599 = vcmp.lt.s32.totalorder %v597, %v598
          %v600 = vld [vmem:[#allocation5] sm:$0xff]
          %v601 = vld [vmem:[#allocation4] sm:$0xff]
          %v602 = vrcp.pop %v601
          %604 = vset.pattern.permute.xlu0 0
          %605 = vperm.xlu0 %604, %v602
          %v606 = vpop.permute.xlu0 %605
          %v608 = vmul.f32 %v600, %v606
          %v609 = vsel %vm599, 1, 0
          %vm610 = vcmp.eq.s32.totalorder %v609, 1
          %v611 = vsel %vm610, %v608, 0.0
          %612 = vst [vmem:[%s293] sm:$0xff] %v611
          %v613 = vld [vmem:[#allocation5 + $0x8] sm:$0xff]
          %v614 = vld [vmem:[#allocation4 + $0x8] sm:$0xff]
          %v615 = vrcp.pop %v614
          %617 = vset.pattern.permute.xlu0 0
          %618 = vperm.xlu0 %617, %v615
          %v619 = vpop.permute.xlu0 %618
          %v621 = vmul.f32 %v613, %v619
          %v622 = vsel %vm610, %v621, 0.0
          %623 = vst [vmem:[%s293 + $0x8] sm:$0xff] %v622
        $region56: #{tpu_custom_call.1} parent=31 // pred_fallthru
          _
        %s624 = sand.u32 %s141, 1
        %s625 = scalar_lea.sflag [#allocation10], %s624
        %s626 = sand.u32 %s141, 1
        %s627 = smul.addr %s626, 16
        %s628 = scalar_lea.vmem [#allocation14], %s627
        // Predicated region
        $region57: #{tpu_custom_call.1} parent=31 // pred_check
          %p629 = pneg %p151
        $region58: #{tpu_custom_call.1} parent=31 // pred_check_branch
          %631 = sbr.rel (%p629) target = $region60
        $region59: #{tpu_custom_call.1} parent=31 // pred_region
          %s633 = ssub.s32 256, 256
          %634 = vsyncadd %s625, %s633
          %s635 = smul.addr %s34, 2
          %s636 = smul.addr %s33, 2
          %s637 = sadd.s32 %s635, %s636
          %s638 = smul.addr %s637, 128
          %s639 = scalar_lea.hbm %s4, %s638
          %s641 = sshll.u32 %s628, 4
          %s642 = int_to_ptr.vmem [resolvable:$true] %s641
          %644 = dma.vmem_to_hbm [thread:$0]  %s642, 256, %s639, %s625
        $region60: #{tpu_custom_call.1} parent=31 // pred_fallthru
          _
      $region32: #{tpu_custom_call.1} parent=5 // pred_fallthru
        _
      %p645 = scmp.le.s32.totalorder 2, %s23
      // Predicated region
      $region61: #{tpu_custom_call.1} parent=5 // pred_check
        %p646 = pneg %p645
      $region62: #{tpu_custom_call.1} parent=5 // pred_check_branch
        %648 = sbr.rel (%p646) target = $region64
      $region63: #{tpu_custom_call.1} parent=5 // pred_region
        %s649 = ssub.s32 %s23, 2
        // Predicated region
        $region65: #{tpu_custom_call.1} parent=63 // pred_check
          %p650 = pneg %p157
        $region66: #{tpu_custom_call.1} parent=63 // pred_check_branch
          %652 = sbr.rel (%p650) target = $region68
        $region67: #{tpu_custom_call.1} parent=63 // pred_region
          %s653 = sand.u32 %s142, 1
          %s654 = scalar_lea.sflag [#allocation10], %s653
          %s655 = sand.u32 %s142, 1
          %s656 = smul.addr %s655, 16
          %s657 = scalar_lea.vmem [#allocation14], %s656
          %658 = dma.done %s654, 256
        $region68: #{tpu_custom_call.1} parent=63 // pred_fallthru
          _
      $region64: #{tpu_custom_call.1} parent=5 // pred_fallthru
        _
    $region6: #{tpu_custom_call.1} parent=1 // loop_footer
      %s27 = sadd.s32 1, %s23
    $region7: #{tpu_custom_call.1} parent=1 // loop_footer_branch
      %22 = sbr.rel target = $region3
    $region8: #{tpu_custom_call.1} parent=1 // loop_exit
      _
    %659 = vsyncpa [#allocation9], 1
    %s660 = scalar_lea.sflag [#allocation9], 1
    %661 = vsyncpa %s660, 1
    %662 = vsyncpa [#allocation12], 1
    %s663 = scalar_lea.sflag [#allocation12], 1
    %664 = vsyncpa %s663, 1
    %665 = vsyncpa [#allocation10], 1
    %s666 = scalar_lea.sflag [#allocation10], 1
    %667 = vsyncpa %s666, 1

</llo_original>
